<compile_context>
chip_gen: v5e
topology: v5e:2x2
jax: 0.10.0
libtpu: 0.0.40
codegen_flags: <defaults>
</compile_context>

<pallas_src>
import jax
import jax.numpy as jnp
from jax.experimental import pallas as pl
from jax.experimental.pallas import tpu as pltpu


def _cdiv(a, b):
    return (a + b - 1) // b


def _round_up(a, b):
    return _cdiv(a, b) * b


def scale_bias_kernel(wb_ref, x_ref, o_ref):
    # wb_ref: (2,) f32 in SMEM (scalar prefetch): [weight, bias]
    # x_ref : (BN, TL) input tile in its native dtype
    # o_ref : (BN, TL) f32 output tile
    w = wb_ref[0]
    b = wb_ref[1]
    o_ref[...] = x_ref[...].astype(jnp.float32) * w + b


def _select_tiles(n, l, in_itemsize, *, target_steps=16, max_out_tile_bytes=2 << 20):
    """Pick a (bn, tl) block for an (n, l) elementwise streaming kernel.

    - tl (lane dim): multiple of 128, or the full dim when l <= 128.
    - bn (sublane dim): multiple of the input dtype's sublane packing
      (8 for 4-byte, 16 for 2-byte, 32 for 1-byte), or the full dim.
    - Aim for >= ~target_steps grid steps while keeping the f32 output tile
      <= 2 MiB (VMEM-safe with double buffering on v5e/v6e/v7x).
    """
    sub = max(8, 32 // in_itemsize)

    # Lane-dim tile.
    if l <= 128:
        tl = l
    else:
        tl = _round_up(_cdiv(l, target_steps), 128)
        tl = max(256, min(tl, 32768))
        tl = min(tl, _round_up(l, 128))
    col_steps = _cdiv(l, tl)

    # Row-dim tile.
    if n <= sub:
        bn = n
    else:
        rows_cap = max(sub, (max_out_tile_bytes // (tl * 4)) // sub * sub)
        row_steps_wanted = max(1, target_steps // col_steps)
        bn = _round_up(_cdiv(n, row_steps_wanted), sub)
        bn = min(bn, rows_cap, _round_up(n, sub))
    return bn, tl


def _pallas_scale_bias(x2d, wb):
    """x2d: (n, l) any float dtype -> (n, l) float32 computing x*w + b."""
    n, l = x2d.shape
    bn, tl = _select_tiles(n, l, jnp.dtype(x2d.dtype).itemsize)
    grid = (pl.cdiv(n, bn), pl.cdiv(l, tl))  # uneven grid: last blocks partial/masked

    return pl.pallas_call(
        scale_bias_kernel,
        out_shape=jax.ShapeDtypeStruct((n, l), jnp.float32),
        grid_spec=pltpu.PrefetchScalarGridSpec(
            num_scalar_prefetch=1,  # wb -> SMEM, passed to index_maps + kernel
            grid=grid,
            in_specs=[
                pl.BlockSpec((bn, tl), lambda i, j, wb_ref: (i, j)),
            ],
            out_specs=pl.BlockSpec((bn, tl), lambda i, j, wb_ref: (i, j)),
        ),
        compiler_params=pltpu.CompilerParams(
            dimension_semantics=("parallel", "parallel"),  # independent tiles
        ),
    )(wb, x2d)


def dummy_model_forward(x, weight, bias, *, use_pallas=None):
    """x: (N, 1, L), weight: (1, 1, 1), bias: (1,) -> (N, 1, L) float32."""
    n, c, l = x.shape
    assert c == 1, "DummyModel's Conv1d has in_channels=1"
    total = n * l

    w = weight.reshape(()).astype(jnp.float32)
    b = bias.reshape(()).astype(jnp.float32)

    if use_pallas is None:
        # Below ~4 MiB the op is a few microseconds of HBM traffic; fused XLA
        # beats pallas_call fixed overhead.
        use_pallas = total * jnp.dtype(x.dtype).itemsize > (4 << 20)

    if not use_pallas:
        return (x.astype(jnp.float32) * w + b).reshape(n, 1, l)

    wb = jnp.stack([w, b])          # (2,) packed scalar-prefetch operand
    x2d = x.reshape(n, l)           # free: drops the size-1 channel dim, no copy
    out2d = _pallas_scale_bias(x2d, wb)
    return out2d.reshape(n, 1, l)


if __name__ == "__main__":
    key = jax.random.PRNGKey(0)
    kx1, kx2, kx3, kx4, kx5, kw, kb = jax.random.split(key, 7)

    # Deterministic Conv1d params: weight (out=1, in=1, k=1), bias (1,)
    weight = jax.random.normal(kw, (1, 1, 1), dtype=jnp.float32) * 0.5
    bias = jax.random.normal(kb, (1,), dtype=jnp.float32) * 0.1

    def ref(x):
        return x.astype(jnp.float32) * weight[0, 0, 0] + bias[0]

    # Case 1: tiny input -> auto-dispatch takes the fused-XLA path.
    x_small = jax.random.normal(kx1, (2, 1, 128), dtype=jnp.float32)
    y_small = dummy_model_forward(x_small, weight, bias)
    jax.block_until_ready(y_small)
    assert y_small.shape == x_small.shape
    assert jnp.allclose(y_small, ref(x_small), atol=1e-6)

    # Case 2: ragged input forced through Pallas (partial lane block, no pad/slice).
    x_ragged = jax.random.normal(kx2, (2, 1, 200), dtype=jnp.float32)
    y_ragged = dummy_model_forward(x_ragged, weight, bias, use_pallas=True)
    jax.block_until_ready(y_ragged)
    assert y_ragged.shape == x_ragged.shape
    assert jnp.allclose(y_ragged, ref(x_ragged), atol=1e-6)

    # Case 3: multi-step grid along the length axis (uneven last block).
    x_long = jax.random.normal(kx3, (4, 1, 5000), dtype=jnp.float32)
    y_long = dummy_model_forward(x_long, weight, bias, use_pallas=True)
    jax.block_until_ready(y_long)
    assert y_long.shape == x_long.shape
    assert jnp.allclose(y_long, ref(x_long), atol=1e-6)

    # Case 4: batch > sublane multiple -> 2-D grid (rows and lanes both tiled).
    x_batch = jax.random.normal(kx4, (16, 1, 300), dtype=jnp.float32)
    y_batch = dummy_model_forward(x_batch, weight, bias, use_pallas=True)
    jax.block_until_ready(y_batch)
    assert y_batch.shape == x_batch.shape
    assert jnp.allclose(y_batch, ref(x_batch), atol=1e-6)

    # Case 5: non-f32 input -> cast happens inside the kernel (output is f32).
    x_bf16 = jax.random.normal(kx5, (4, 1, 256), dtype=jnp.float32).astype(jnp.bfloat16)
    y_bf16 = dummy_model_forward(x_bf16, weight, bias, use_pallas=True)
    jax.block_until_ready(y_bf16)
    assert y_bf16.shape == x_bf16.shape
    assert y_bf16.dtype == jnp.float32
    assert jnp.allclose(y_bf16, ref(x_bf16), atol=1e-6)

    print("KERNEL_OK")
</pallas_src>

<mosaic_0001>
module attributes {stable_mosaic.version = 11 : i64} {
  func.func @scale_bias_kernel(%arg0: i32, %arg1: i32, %arg2: memref<2xf32, #tpu.memory_space<smem>>, %arg3: memref<2x256xf32, #tpu.memory_space<vmem>>, %arg4: memref<2x256xf32, #tpu.memory_space<vmem>>) attributes {dimension_semantics = [#tpu.dimension_semantics<parallel>, #tpu.dimension_semantics<parallel>], iteration_bounds = array<i64: 1, 1>, scalar_prefetch = 1 : i64, scratch_operands = 0 : i64, tpu.core_type = #tpu.core_type<tc>, window_params = [{transform_indices = @transform_0, window_bounds = array<i64: 2, 256>}, {transform_indices = @transform_1, window_bounds = array<i64: 2, 256>}]} {
    %c0 = arith.constant 0 : index
    %0 = memref.load %arg2[%c0] : memref<2xf32, #tpu.memory_space<smem>>
    %c1 = arith.constant 1 : index
    %1 = memref.load %arg2[%c1] : memref<2xf32, #tpu.memory_space<smem>>
    %c0_0 = arith.constant 0 : index
    %c0_1 = arith.constant 0 : index
    %2 = vector.load %arg3[%c0_0, %c0_1] : memref<2x256xf32, #tpu.memory_space<vmem>>, vector<2x256xf32>
    %3 = vector.broadcast %0 : f32 to vector<2x256xf32>
    %4 = arith.mulf %2, %3 : vector<2x256xf32>
    %5 = vector.broadcast %1 : f32 to vector<2x256xf32>
    %6 = arith.addf %4, %5 : vector<2x256xf32>
    %c0_2 = arith.constant 0 : index
    %c0_3 = arith.constant 0 : index
    %7 = vector.load %arg4[%c0_2, %c0_3] : memref<2x256xf32, #tpu.memory_space<vmem>>, vector<2x256xf32>
    tpu.vector_store %arg4[%c0_2, %c0_3], %6 {strides = array<i32>} : memref<2x256xf32, #tpu.memory_space<vmem>>, vector<2x256xf32>,
    return
  }
  func.func @transform_0(%arg0: i32, %arg1: i32, %arg2: memref<2xf32, #tpu.memory_space<smem>>) -> (i32, i32) {
    %c0_i32 = arith.constant 0 : i32
    return %arg0, %arg1 : i32, i32
  }
  func.func @transform_1(%arg0: i32, %arg1: i32, %arg2: memref<2xf32, #tpu.memory_space<smem>>) -> (i32, i32) {
    %c0_i32 = arith.constant 0 : i32
    return %arg0, %arg1 : i32, i32
  }
}

</mosaic_0001>

<llo_original>
// kernel: tpu_custom_call.1
$region0: #{tpu_custom_call.1}
  #allocation0 [shape = 'u32[]', space=smem, size = 0x4, offset = 0x4, fixed_abs, tag = 'smem constant byte address 0x4 - core index']
  #allocation1 [shape = 'u32[72,128]{1,0:T(1,128)}', space=vmem, size = 0x9000, scoped, tag = 'internal scratch']
  #allocation2 [shape = 's32[1]{0}', space=sflag, size = 0x4, scoped, tag = 'scoped memory for tpu_custom_call.1']
  #allocation3 [shape = 'u8[512]{0}', space=smem, size = 0x200, scoped, tag = 'prefetched SMEM operand 0']
  %s0 = inlined_call_operand.hbm [shape: f32[2], index: 0, kind: input, shape index: {}]
  %s1 = inlined_call_operand.hbm [shape: f32[2,200], index: 1, kind: input, shape index: {}]
  %s2 = inlined_call_operand.hbm [shape: f32[2,200], index: 2, kind: output, shape index: {}]
  %s3 = sld [smem:[#allocation0]]
  $region18: #{tpu_custom_call.1} parent=0
    _
  %s5 = ssub.s32 1, %s3
  %s6 = scalar_select 0, %s5, %s3
  %s8 = sshll.u32 %s0, 4
  %s9 = int_to_ptr.hbm [resolvable:$true] %s8
  %11 = dma.hbm_to_smem %s9, 16, [#allocation3], [#allocation2]
  %13 = dma.done [#allocation2], 16
  %14 = sfence
  $region1: #{tpu_custom_call.1} parent=0
    #allocation4 [shape = 'u8[2048]{0}', space=vmem, size = 0x800, scoped, tag = 'input window, operand 1, single buffered']
    #allocation5 [shape = 's32[1]{0}', space=sflag, size = 0x4, scoped, tag = 'scoped memory for tpu_custom_call.1']
    #allocation6 [shape = 's32[1]{0}', space=sflag, size = 0x4, scoped, tag = 'scoped memory for tpu_custom_call.1']
    #allocation7 [shape = 'u8[2048]{0}', space=vmem, size = 0x800, scoped, tag = 'output window, operand 0, single buffered']
    %15 = vsyncpa [#allocation5], 0
    %16 = vsyncpa [#allocation6], 0
    // Predicated region
    $region2: #{tpu_custom_call.1} parent=1 // pred_check
      _
    $region3: #{tpu_custom_call.1} parent=1 // pred_check_branch
      %18 = sbr.rel (0) target = $region5
    $region4: #{tpu_custom_call.1} parent=1 // pred_region
      %20 = vsyncadd [#allocation5], 0
      %s22 = sshll.u32 %s1, 4
      %s23 = int_to_ptr.hbm [resolvable:$true] %s22
      %s24 = sshll.u32 [#allocation4], 4
      %s25 = int_to_ptr.vmem [resolvable:$true] %s24
      %27 = dma.hbm_to_vmem [thread:$0]  %s23, 64, %s25, [#allocation5]
    $region5: #{tpu_custom_call.1} parent=1 // pred_fallthru
      _
    // Predicated region
    $region6: #{tpu_custom_call.1} parent=1 // pred_check
      _
    $region7: #{tpu_custom_call.1} parent=1 // pred_check_branch
      %29 = sbr.rel (0) target = $region9
    $region8: #{tpu_custom_call.1} parent=1 // pred_region
      %31 = dma.done [#allocation5], 64
    $region9: #{tpu_custom_call.1} parent=1 // pred_fallthru
      _
    %s32 = sld [smem:[#allocation3]]
    %s33 = sld [smem:[#allocation3 + $0x1]]
    %v34 = vld [vmem:[#allocation4] sm:$0xf]
    %v35 = vstv %s32
    %v36 = vmul.f32 %v34, %v35
    %v37 = vstv %s33
    %v38 = vadd.f32 %v36, %v37
    %39 = vst [vmem:[#allocation7] sm:$0xf] %v38
    // Predicated region
    $region10: #{tpu_custom_call.1} parent=1 // pred_check
      _
    $region11: #{tpu_custom_call.1} parent=1 // pred_check_branch
      %41 = sbr.rel (0) target = $region13
    $region12: #{tpu_custom_call.1} parent=1 // pred_region
      %43 = vsyncadd [#allocation6], 0
      %s45 = sshll.u32 [#allocation7], 4
      %s46 = int_to_ptr.vmem [resolvable:$true] %s45
      %s47 = sshll.u32 %s2, 4
      %s48 = int_to_ptr.hbm [resolvable:$true] %s47
      %50 = dma.vmem_to_hbm [thread:$0]  %s46, 64, %s48, [#allocation6]
    $region13: #{tpu_custom_call.1} parent=1 // pred_fallthru
      _
    // Predicated region
    $region14: #{tpu_custom_call.1} parent=1 // pred_check
      _
    $region15: #{tpu_custom_call.1} parent=1 // pred_check_branch
      %52 = sbr.rel (0) target = $region17
    $region16: #{tpu_custom_call.1} parent=1 // pred_region
      %54 = dma.done [#allocation6], 64
    $region17: #{tpu_custom_call.1} parent=1 // pred_fallthru
      _
    %55 = vsyncpa [#allocation5], 1
    %56 = vsyncpa [#allocation6], 1

</llo_original>
